<compile_context>
chip_gen: v5e
topology: v5e:2x2
jax: 0.10.0
libtpu: 0.0.40
codegen_flags: <defaults>
</compile_context>

<pallas_src>
import functools

import jax
import jax.numpy as jnp
from jax.experimental import pallas as pl
from jax.experimental.pallas import tpu as pltpu


def _round_up(x, m):
    return (x + m - 1) // m * m


def _pick_tiles(in_pad, out_pad, *, budget_bytes=28 << 20):
    """Pick (tm, tk): node tile and in_feats (reduction) tile.

    Prefers the largest node tile, and within that the full-K tile (single reduction
    step, weight effectively resident), subject to a double-buffered VMEM budget.
    """
    k_candidates = (in_pad, 4096, 2048, 1024, 512, 256, 128)
    for tm in (1024, 512, 256, 128):
        for tk in k_candidates:
            if tk > in_pad or in_pad % tk != 0:
                continue
            need = (2 * tm * tk * 2            # double-buffered bf16 feature tile
                    + 2 * tk * out_pad * 2     # double-buffered bf16 weight tile
                    + 2 * tm * out_pad * 4     # double-buffered f32 output tile
                    + tm * out_pad * 4         # f32 accumulator scratch
                    + out_pad * 4)             # f32 bias row
            if need <= budget_bytes:
                return tm, tk
    return 128, 128


def _node_apply_kernel(x_ref, w_ref, b_ref, o_ref, acc_ref):
    # x_ref: (tm, tk) bf16 | w_ref: (tk, out_pad) bf16 | b_ref: (1, out_pad) f32
    # o_ref: (tm, out_pad) f32 | acc_ref: (tm, out_pad) f32 scratch
    k = pl.program_id(1)

    @pl.when(k == 0)
    def _():
        acc_ref[...] = jnp.zeros_like(acc_ref)

    acc_ref[...] += jnp.dot(x_ref[...], w_ref[...],
                            preferred_element_type=jnp.float32)

    @pl.when(k == pl.num_programs(1) - 1)
    def _():
        h = acc_ref[...] + b_ref[...]                      # bias broadcast over node axis
        o_ref[...] = jnp.maximum(h, 0.0).astype(o_ref.dtype)  # activation = ReLU


@functools.partial(jax.jit, static_argnames=("tm", "tk"))
def node_apply(features, weight, bias, *, tm=None, tk=None):
    """features: (N, in_feats) f32; weight: (out_feats, in_feats) [nn.Linear layout];
    bias: (out_feats,). Returns relu(features @ weight.T + bias) as (N, out_feats) f32."""
    n, in_feats = features.shape
    out_feats = weight.shape[0]

    # Lane-dense padding (multiples of 128 on the lane axis).
    in_pad = _round_up(in_feats, 128)
    out_pad = _round_up(out_feats, 128)

    # bf16 streams; accumulation stays f32 inside the kernel.
    x = features.astype(jnp.bfloat16)
    w_t = weight.T.astype(jnp.bfloat16)                      # (in_feats, out_feats)
    if in_pad != in_feats:
        x = jnp.pad(x, ((0, 0), (0, in_pad - in_feats)))
    if in_pad != in_feats or out_pad != out_feats:
        w_t = jnp.pad(w_t, ((0, in_pad - in_feats), (0, out_pad - out_feats)))
    b2 = jnp.pad(bias.astype(jnp.float32), (0, out_pad - out_feats)).reshape(1, out_pad)

    # Tile sizes: big (roofline) but VMEM-safe.
    auto_tm, auto_tk = _pick_tiles(in_pad, out_pad)
    if tm is None:
        tm = auto_tm
    if tk is None:
        tk = auto_tk
    tm = min(tm, _round_up(n, 128))
    n_pad = _round_up(n, tm)
    if n_pad != n:
        x = jnp.pad(x, ((0, n_pad - n), (0, 0)))

    grid_m = n_pad // tm
    grid_k = in_pad // tk

    flops = 2 * n_pad * in_pad * out_pad
    bytes_accessed = (n_pad * in_pad * 2                 # bf16 features in
                      + n_pad * out_pad * 4              # f32 output out
                      + in_pad * out_pad * 2 * grid_m    # bf16 weight (re-streamed per node tile)
                      + out_pad * 4)                     # f32 bias
    cost = pl.CostEstimate(flops=flops, transcendentals=0,
                           bytes_accessed=bytes_accessed)

    out = pl.pallas_call(
        _node_apply_kernel,
        out_shape=jax.ShapeDtypeStruct((n_pad, out_pad), jnp.float32),
        grid_spec=pltpu.PrefetchScalarGridSpec(
            num_scalar_prefetch=0,
            grid=(grid_m, grid_k),
            in_specs=[
                pl.BlockSpec((tm, tk), lambda i, k: (i, k)),        # node tile
                pl.BlockSpec((tk, out_pad), lambda i, k: (k, 0)),   # weight tile
                pl.BlockSpec((1, out_pad), lambda i, k: (0, 0)),    # bias row
            ],
            out_specs=pl.BlockSpec((tm, out_pad), lambda i, k: (i, 0)),
            scratch_shapes=[pltpu.VMEM((tm, out_pad), jnp.float32)],
        ),
        compiler_params=pltpu.CompilerParams(
            dimension_semantics=("parallel", "arbitrary"),
        ),
        cost_estimate=cost,
    )(x, w_t, b2)

    return out[:n, :out_feats]


if __name__ == "__main__":
    key = jax.random.PRNGKey(0)
    k_x, k_w, k_b = jax.random.split(key, 3)

    N, IN_FEATS, OUT_FEATS = 256, 32, 64  # small shapes consistent with a GCN layer

    # nn.Linear-shaped parameters: W (out, in), b (out,).
    w = jax.random.normal(k_w, (OUT_FEATS, IN_FEATS), jnp.float32) * 0.1
    b = jax.random.normal(k_b, (OUT_FEATS,), jnp.float32) * 0.1
    x = jax.random.normal(k_x, (N, IN_FEATS), jnp.float32)

    out = node_apply(x, w, b)
    out = jax.block_until_ready(out)
    assert out.shape == (N, OUT_FEATS)

    # Strict check against a reference that uses the same bf16 input casts.
    xb = x.astype(jnp.bfloat16).astype(jnp.float32)
    wb = w.astype(jnp.bfloat16).astype(jnp.float32)
    ref_bf16 = jnp.maximum(xb @ wb.T + b, 0.0)
    assert jnp.allclose(out, ref_bf16, atol=1e-3, rtol=1e-3), "mismatch vs bf16 reference"

    # Loose sanity check against the full-f32 reference (bf16 stream quantization only).
    ref_f32 = jnp.maximum(x @ w.T + b, 0.0)
    assert jnp.allclose(out, ref_f32, atol=2e-2, rtol=2e-2), "mismatch vs f32 reference"

    print("KERNEL_OK")
</pallas_src>

<mosaic_0001>
module attributes {stable_mosaic.version = 11 : i64} {
  func.func @_node_apply_kernel(%arg0: i32, %arg1: i32, %arg2: memref<256x128xbf16, #tpu.memory_space<vmem>>, %arg3: memref<128x128xbf16, #tpu.memory_space<vmem>>, %arg4: memref<1x128xf32, #tpu.memory_space<vmem>>, %arg5: memref<256x128xf32, #tpu.memory_space<vmem>>, %arg6: memref<256x128xf32, #tpu.memory_space<vmem>>) attributes {dimension_semantics = [#tpu.dimension_semantics<parallel>, #tpu.dimension_semantics<arbitrary>], iteration_bounds = array<i64: 1, 1>, scalar_prefetch = 0 : i64, scratch_operands = 1 : i64, tpu.core_type = #tpu.core_type<tc>, window_params = [{transform_indices = @transform_0, window_bounds = array<i64: 256, 128>}, {transform_indices = @transform_1, window_bounds = array<i64: 128, 128>}, {pipeline_mode = #tpu.pipeline_mode<synchronous>, transform_indices = @transform_2, window_bounds = array<i64: 1, 128>}, {transform_indices = @transform_3, window_bounds = array<i64: 256, 128>}]} {
    %c0_i32 = arith.constant 0 : i32
    %0 = arith.cmpi eq, %arg1, %c0_i32 : i32
    %1 = arith.extui %0 : i1 to i32
    %c0_i32_0 = arith.constant 0 : i32
    %2 = arith.cmpi ne, %1, %c0_i32_0 : i32
    scf.if %2 {
      %cst_10 = arith.constant 0.000000e+00 : f32
      %12 = vector.broadcast %cst_10 : f32 to vector<256x128xf32>
      %c0_11 = arith.constant 0 : index
      %c0_12 = arith.constant 0 : index
      %13 = vector.load %arg6[%c0_11, %c0_12] : memref<256x128xf32, #tpu.memory_space<vmem>>, vector<256x128xf32>
      tpu.vector_store %arg6[%c0_11, %c0_12], %12 {strides = array<i32>} : memref<256x128xf32, #tpu.memory_space<vmem>>, vector<256x128xf32>,
    } else {
    }
    %c0 = arith.constant 0 : index
    %c0_1 = arith.constant 0 : index
    %3 = vector.load %arg6[%c0, %c0_1] : memref<256x128xf32, #tpu.memory_space<vmem>>, vector<256x128xf32>
    %c0_2 = arith.constant 0 : index
    %c0_3 = arith.constant 0 : index
    %4 = vector.load %arg2[%c0_2, %c0_3] : memref<256x128xbf16, #tpu.memory_space<vmem>>, vector<256x128xbf16>
    %c0_4 = arith.constant 0 : index
    %c0_5 = arith.constant 0 : index
    %5 = vector.load %arg3[%c0_4, %c0_5] : memref<128x128xbf16, #tpu.memory_space<vmem>>, vector<128x128xbf16>
    %cst = arith.constant dense<0.000000e+00> : vector<256x128xf32>
    %6 = tpu.matmul %4, %5, %cst {dimension_numbers = #tpu.dot_dimension_numbers<[1], [0], [0], [1], [0, 0, 1, 1], [], []>} : vector<256x128xbf16>, vector<128x128xbf16>, vector<256x128xf32> -> vector<256x128xf32>
    %7 = arith.addf %3, %6 : vector<256x128xf32>
    %c0_6 = arith.constant 0 : index
    %c0_7 = arith.constant 0 : index
    %8 = vector.load %arg6[%c0_6, %c0_7] : memref<256x128xf32, #tpu.memory_space<vmem>>, vector<256x128xf32>
    tpu.vector_store %arg6[%c0_6, %c0_7], %7 {strides = array<i32>} : memref<256x128xf32, #tpu.memory_space<vmem>>, vector<256x128xf32>,
    %c0_i32_8 = arith.constant 0 : i32
    %9 = arith.cmpi eq, %arg1, %c0_i32_8 : i32
    %10 = arith.extui %9 : i1 to i32
    %c0_i32_9 = arith.constant 0 : i32
    %11 = arith.cmpi ne, %10, %c0_i32_9 : i32
    scf.if %11 {
      %c0_10 = arith.constant 0 : index
      %c0_11 = arith.constant 0 : index
      %12 = vector.load %arg6[%c0_10, %c0_11] : memref<256x128xf32, #tpu.memory_space<vmem>>, vector<256x128xf32>
      %c0_12 = arith.constant 0 : index
      %c0_13 = arith.constant 0 : index
      %13 = vector.load %arg4[%c0_12, %c0_13] : memref<1x128xf32, #tpu.memory_space<vmem>>, vector<1x128xf32>
      %14 = vector.broadcast %13 : vector<1x128xf32> to vector<256x128xf32>
      %15 = arith.addf %12, %14 : vector<256x128xf32>
      %cst_14 = arith.constant 0.000000e+00 : f32
      %16 = vector.broadcast %cst_14 : f32 to vector<256x128xf32>
      %17 = arith.maximumf %15, %16 : vector<256x128xf32>
      %c0_15 = arith.constant 0 : index
      %c0_16 = arith.constant 0 : index
      %18 = vector.load %arg5[%c0_15, %c0_16] : memref<256x128xf32, #tpu.memory_space<vmem>>, vector<256x128xf32>
      tpu.vector_store %arg5[%c0_15, %c0_16], %17 {strides = array<i32>} : memref<256x128xf32, #tpu.memory_space<vmem>>, vector<256x128xf32>,
    } else {
    }
    return
  }
  func.func @transform_0(%arg0: i32, %arg1: i32) -> (i32, i32) {
    %c0_i32 = arith.constant 0 : i32
    return %arg0, %arg1 : i32, i32
  }
  func.func @transform_1(%arg0: i32, %arg1: i32) -> (i32, i32) {
    %c0_i32 = arith.constant 0 : i32
    %c0_i32_0 = arith.constant 0 : i32
    return %arg1, %c0_i32 : i32, i32
  }
  func.func @transform_2(%arg0: i32, %arg1: i32) -> (i32, i32) {
    %c0_i32 = arith.constant 0 : i32
    %c0_i32_0 = arith.constant 0 : i32
    %c0_i32_1 = arith.constant 0 : i32
    return %c0_i32, %c0_i32_0 : i32, i32
  }
  func.func @transform_3(%arg0: i32, %arg1: i32) -> (i32, i32) {
    %c0_i32 = arith.constant 0 : i32
    %c0_i32_0 = arith.constant 0 : i32
    return %arg0, %c0_i32 : i32, i32
  }
}

</mosaic_0001>

<llo_original>
// kernel: node_apply.1
$region0: #{node_apply.1}
  #allocation0 [shape = 'u32[]', space=smem, size = 0x4, offset = 0x4, fixed_abs, tag = 'smem constant byte address 0x4 - core index']
  #allocation1 [shape = 'u32[72,128]{1,0:T(1,128)}', space=vmem, size = 0x9000, scoped, tag = 'internal scratch']
  #allocation2 [shape = 'f32[256,128]{1,0:T(8,128)}', space=vmem, size = 0x20000, scoped, tag = 'scratch operand']
  %s0 = inlined_call_operand.vmem [shape: bf16[256,128], index: 0, kind: input, shape index: {}]
  %s1 = inlined_call_operand.vmem [shape: bf16[128,128], index: 1, kind: input, shape index: {}]
  %s2 = inlined_call_operand.vmem [shape: f32[1,128], index: 2, kind: input, shape index: {}]
  %s3 = inlined_call_operand.vmem [shape: f32[256,128], index: 3, kind: output, shape index: {}]
  %s4 = sld [smem:[#allocation0]]
  $region30: #{node_apply.1} parent=0
    _
  %s6 = ssub.s32 1, %s4
  %s7 = scalar_select 0, %s6, %s4
  // Predicated region
  $region2: #{node_apply.1} parent=0 // pred_check
    _
  $region3: #{node_apply.1} parent=0 // pred_check_branch
    %9 = sbr.rel (0) target = $region5
  $region4: #{node_apply.1} parent=0 // pred_region
    _
  $region5: #{node_apply.1} parent=0 // pred_fallthru
    _
  // Predicated region
  $region6: #{node_apply.1} parent=0 // pred_check
    _
  $region7: #{node_apply.1} parent=0 // pred_check_branch
    %11 = sbr.rel (0) target = $region9
  $region8: #{node_apply.1} parent=0 // pred_region
    _
  $region9: #{node_apply.1} parent=0 // pred_fallthru
    _
  // Predicated region
  $region10: #{node_apply.1} parent=0 // pred_check
    _
  $region11: #{node_apply.1} parent=0 // pred_check_branch
    %13 = sbr.rel (0) target = $region13
  $region12: #{node_apply.1} parent=0 // pred_region
    _
  $region13: #{node_apply.1} parent=0 // pred_fallthru
    _
  %p14 = scmp.eq.s32.totalorder 0, 0
  // Predicated region
  $region14: #{node_apply.1} parent=0 // pred_check
    %p15 = pneg %p14
  $region15: #{node_apply.1} parent=0 // pred_check_branch
    %17 = sbr.rel (%p15) target = $region17
  $region16: #{node_apply.1} parent=0 // pred_region
    %18 = vst [vmem:[#allocation2] sm:$0xff] 0.0
    %19 = vst [vmem:[#allocation2 + $0x8] sm:$0xff] 0.0
    %20 = vst [vmem:[#allocation2 + $0x10] sm:$0xff] 0.0
    %21 = vst [vmem:[#allocation2 + $0x18] sm:$0xff] 0.0
    %22 = vst [vmem:[#allocation2 + $0x20] sm:$0xff] 0.0
    %23 = vst [vmem:[#allocation2 + $0x28] sm:$0xff] 0.0
    %24 = vst [vmem:[#allocation2 + $0x30] sm:$0xff] 0.0
    %25 = vst [vmem:[#allocation2 + $0x38] sm:$0xff] 0.0
    %26 = vst [vmem:[#allocation2 + $0x40] sm:$0xff] 0.0
    %27 = vst [vmem:[#allocation2 + $0x48] sm:$0xff] 0.0
    %28 = vst [vmem:[#allocation2 + $0x50] sm:$0xff] 0.0
    %29 = vst [vmem:[#allocation2 + $0x58] sm:$0xff] 0.0
    %30 = vst [vmem:[#allocation2 + $0x60] sm:$0xff] 0.0
    %31 = vst [vmem:[#allocation2 + $0x68] sm:$0xff] 0.0
    %32 = vst [vmem:[#allocation2 + $0x70] sm:$0xff] 0.0
    %33 = vst [vmem:[#allocation2 + $0x78] sm:$0xff] 0.0
    %34 = vst [vmem:[#allocation2 + $0x80] sm:$0xff] 0.0
    %35 = vst [vmem:[#allocation2 + $0x88] sm:$0xff] 0.0
    %36 = vst [vmem:[#allocation2 + $0x90] sm:$0xff] 0.0
    %37 = vst [vmem:[#allocation2 + $0x98] sm:$0xff] 0.0
    %38 = vst [vmem:[#allocation2 + $0xa0] sm:$0xff] 0.0
    %39 = vst [vmem:[#allocation2 + $0xa8] sm:$0xff] 0.0
    %40 = vst [vmem:[#allocation2 + $0xb0] sm:$0xff] 0.0
    %41 = vst [vmem:[#allocation2 + $0xb8] sm:$0xff] 0.0
    %42 = vst [vmem:[#allocation2 + $0xc0] sm:$0xff] 0.0
    %43 = vst [vmem:[#allocation2 + $0xc8] sm:$0xff] 0.0
    %44 = vst [vmem:[#allocation2 + $0xd0] sm:$0xff] 0.0
    %45 = vst [vmem:[#allocation2 + $0xd8] sm:$0xff] 0.0
    %46 = vst [vmem:[#allocation2 + $0xe0] sm:$0xff] 0.0
    %47 = vst [vmem:[#allocation2 + $0xe8] sm:$0xff] 0.0
    %48 = vst [vmem:[#allocation2 + $0xf0] sm:$0xff] 0.0
    %49 = vst [vmem:[#allocation2 + $0xf8] sm:$0xff] 0.0
  $region17: #{node_apply.1} parent=0 // pred_fallthru
    _
  %v50 = vld [vmem:[#allocation2] sm:$0xff]
  %v51 = vld [vmem:[#allocation2 + $0x8] sm:$0xff]
  %v52 = vld [vmem:[#allocation2 + $0x10] sm:$0xff]
  %v53 = vld [vmem:[#allocation2 + $0x18] sm:$0xff]
  %v54 = vld [vmem:[#allocation2 + $0x20] sm:$0xff]
  %v55 = vld [vmem:[#allocation2 + $0x28] sm:$0xff]
  %v56 = vld [vmem:[#allocation2 + $0x30] sm:$0xff]
  %v57 = vld [vmem:[#allocation2 + $0x38] sm:$0xff]
  %v58 = vld [vmem:[#allocation2 + $0x40] sm:$0xff]
  %v59 = vld [vmem:[#allocation2 + $0x48] sm:$0xff]
  %v60 = vld [vmem:[#allocation2 + $0x50] sm:$0xff]
  %v61 = vld [vmem:[#allocation2 + $0x58] sm:$0xff]
  %v62 = vld [vmem:[#allocation2 + $0x60] sm:$0xff]
  %v63 = vld [vmem:[#allocation2 + $0x68] sm:$0xff]
  %v64 = vld [vmem:[#allocation2 + $0x70] sm:$0xff]
  %v65 = vld [vmem:[#allocation2 + $0x78] sm:$0xff]
  %v66 = vld [vmem:[#allocation2 + $0x80] sm:$0xff]
  %v67 = vld [vmem:[#allocation2 + $0x88] sm:$0xff]
  %v68 = vld [vmem:[#allocation2 + $0x90] sm:$0xff]
  %v69 = vld [vmem:[#allocation2 + $0x98] sm:$0xff]
  %v70 = vld [vmem:[#allocation2 + $0xa0] sm:$0xff]
  %v71 = vld [vmem:[#allocation2 + $0xa8] sm:$0xff]
  %v72 = vld [vmem:[#allocation2 + $0xb0] sm:$0xff]
  %v73 = vld [vmem:[#allocation2 + $0xb8] sm:$0xff]
  %v74 = vld [vmem:[#allocation2 + $0xc0] sm:$0xff]
  %v75 = vld [vmem:[#allocation2 + $0xc8] sm:$0xff]
  %v76 = vld [vmem:[#allocation2 + $0xd0] sm:$0xff]
  %v77 = vld [vmem:[#allocation2 + $0xd8] sm:$0xff]
  %v78 = vld [vmem:[#allocation2 + $0xe0] sm:$0xff]
  %v79 = vld [vmem:[#allocation2 + $0xe8] sm:$0xff]
  %v80 = vld [vmem:[#allocation2 + $0xf0] sm:$0xff]
  %v81 = vld [vmem:[#allocation2 + $0xf8] sm:$0xff]
  %v82 = vld [vmem:[%s0] sm:$0xf]
  %v83 = vld [vmem:[%s0 + $0x4] sm:$0xf]
  %v84 = vld [vmem:[%s0 + $0x8] sm:$0xf]
  %v85 = vld [vmem:[%s0 + $0xc] sm:$0xf]
  %v86 = vld [vmem:[%s0 + $0x10] sm:$0xf]
  %v87 = vld [vmem:[%s0 + $0x14] sm:$0xf]
  %v88 = vld [vmem:[%s0 + $0x18] sm:$0xf]
  %v89 = vld [vmem:[%s0 + $0x1c] sm:$0xf]
  %v90 = vld [vmem:[%s0 + $0x20] sm:$0xf]
  %v91 = vld [vmem:[%s0 + $0x24] sm:$0xf]
  %v92 = vld [vmem:[%s0 + $0x28] sm:$0xf]
  %v93 = vld [vmem:[%s0 + $0x2c] sm:$0xf]
  %v94 = vld [vmem:[%s0 + $0x30] sm:$0xf]
  %v95 = vld [vmem:[%s0 + $0x34] sm:$0xf]
  %v96 = vld [vmem:[%s0 + $0x38] sm:$0xf]
  %v97 = vld [vmem:[%s0 + $0x3c] sm:$0xf]
  %v98 = vld [vmem:[%s0 + $0x40] sm:$0xf]
  %v99 = vld [vmem:[%s0 + $0x44] sm:$0xf]
  %v100 = vld [vmem:[%s0 + $0x48] sm:$0xf]
  %v101 = vld [vmem:[%s0 + $0x4c] sm:$0xf]
  %v102 = vld [vmem:[%s0 + $0x50] sm:$0xf]
  %v103 = vld [vmem:[%s0 + $0x54] sm:$0xf]
  %v104 = vld [vmem:[%s0 + $0x58] sm:$0xf]
  %v105 = vld [vmem:[%s0 + $0x5c] sm:$0xf]
  %v106 = vld [vmem:[%s0 + $0x60] sm:$0xf]
  %v107 = vld [vmem:[%s0 + $0x64] sm:$0xf]
  %v108 = vld [vmem:[%s0 + $0x68] sm:$0xf]
  %v109 = vld [vmem:[%s0 + $0x6c] sm:$0xf]
  %v110 = vld [vmem:[%s0 + $0x70] sm:$0xf]
  %v111 = vld [vmem:[%s0 + $0x74] sm:$0xf]
  %v112 = vld [vmem:[%s0 + $0x78] sm:$0xf]
  %v113 = vld [vmem:[%s0 + $0x7c] sm:$0xf]
  %v114 = vld [vmem:[%s1] sm:$0xf]
  %v115 = vld [vmem:[%s1 + $0x4] sm:$0xf]
  %v116 = vld [vmem:[%s1 + $0x8] sm:$0xf]
  %v117 = vld [vmem:[%s1 + $0xc] sm:$0xf]
  %v118 = vld [vmem:[%s1 + $0x10] sm:$0xf]
  %v119 = vld [vmem:[%s1 + $0x14] sm:$0xf]
  %v120 = vld [vmem:[%s1 + $0x18] sm:$0xf]
  %v121 = vld [vmem:[%s1 + $0x1c] sm:$0xf]
  %v122 = vld [vmem:[%s1 + $0x20] sm:$0xf]
  %v123 = vld [vmem:[%s1 + $0x24] sm:$0xf]
  %v124 = vld [vmem:[%s1 + $0x28] sm:$0xf]
  %v125 = vld [vmem:[%s1 + $0x2c] sm:$0xf]
  %v126 = vld [vmem:[%s1 + $0x30] sm:$0xf]
  %v127 = vld [vmem:[%s1 + $0x34] sm:$0xf]
  %v128 = vld [vmem:[%s1 + $0x38] sm:$0xf]
  %v129 = vld [vmem:[%s1 + $0x3c] sm:$0xf]
  %v162 = vunpack.c.l.b16 %v82
  %v163 = vunpack.c.l.b16 %v83
  %v164 = vunpack.c.l.b16 %v84
  %v165 = vunpack.c.l.b16 %v85
  %v166 = vunpack.c.l.b16 %v86
  %v167 = vunpack.c.l.b16 %v87
  %v168 = vunpack.c.l.b16 %v88
  %v169 = vunpack.c.l.b16 %v89
  %v170 = vunpack.c.l.b16 %v90
  %v171 = vunpack.c.l.b16 %v91
  %v172 = vunpack.c.l.b16 %v92
  %v173 = vunpack.c.l.b16 %v93
  %v174 = vunpack.c.l.b16 %v94
  %v175 = vunpack.c.l.b16 %v95
  %v176 = vunpack.c.l.b16 %v96
  %v177 = vunpack.c.l.b16 %v97
  %v178 = vunpack.c.l.b16 %v98
  %v179 = vunpack.c.l.b16 %v99
  %v180 = vunpack.c.l.b16 %v100
  %v181 = vunpack.c.l.b16 %v101
  %v182 = vunpack.c.l.b16 %v102
  %v183 = vunpack.c.l.b16 %v103
  %v184 = vunpack.c.l.b16 %v104
  %v185 = vunpack.c.l.b16 %v105
  %v186 = vunpack.c.l.b16 %v106
  %v187 = vunpack.c.l.b16 %v107
  %v188 = vunpack.c.l.b16 %v108
  %v189 = vunpack.c.l.b16 %v109
  %v190 = vunpack.c.l.b16 %v110
  %v191 = vunpack.c.l.b16 %v111
  %v192 = vunpack.c.l.b16 %v112
  %v193 = vunpack.c.l.b16 %v113
  %v194 = vpack.c.b16 %v163, %v162
  %v195 = vpack.c.b16 %v165, %v164
  %v196 = vpack.c.b16 %v167, %v166
  %v197 = vpack.c.b16 %v169, %v168
  %v198 = vpack.c.b16 %v171, %v170
  %v199 = vpack.c.b16 %v173, %v172
  %v200 = vpack.c.b16 %v175, %v174
  %v201 = vpack.c.b16 %v177, %v176
  %v202 = vpack.c.b16 %v179, %v178
  %v203 = vpack.c.b16 %v181, %v180
  %v204 = vpack.c.b16 %v183, %v182
  %v205 = vpack.c.b16 %v185, %v184
  %v206 = vpack.c.b16 %v187, %v186
  %v207 = vpack.c.b16 %v189, %v188
  %v208 = vpack.c.b16 %v191, %v190
  %v209 = vpack.c.b16 %v193, %v192
  %v242 = vunpack.c.l.b16 %v114
  %v243 = vunpack.c.l.b16 %v115
  %v244 = vunpack.c.l.b16 %v116
  %v245 = vunpack.c.l.b16 %v117
  %v246 = vunpack.c.l.b16 %v118
  %v247 = vunpack.c.l.b16 %v119
  %v248 = vunpack.c.l.b16 %v120
  %v249 = vunpack.c.l.b16 %v121
  %v250 = vunpack.c.l.b16 %v122
  %v251 = vunpack.c.l.b16 %v123
  %v252 = vunpack.c.l.b16 %v124
  %v253 = vunpack.c.l.b16 %v125
  %v254 = vunpack.c.l.b16 %v126
  %v255 = vunpack.c.l.b16 %v127
  %v256 = vunpack.c.l.b16 %v128
  %v257 = vunpack.c.l.b16 %v129
  %v258 = vpack.c.b16 %v243, %v242
  %v259 = vpack.c.b16 %v245, %v244
  %v260 = vpack.c.b16 %v247, %v246
  %v261 = vpack.c.b16 %v249, %v248
  %v262 = vpack.c.b16 %v251, %v250
  %v263 = vpack.c.b16 %v253, %v252
  %v264 = vpack.c.b16 %v255, %v254
  %v265 = vpack.c.b16 %v257, %v256
  %274 = vmatpush.bf16.msra.mxu0 %v265
  %275 = vmatpush.bf16.msra.mxu0 %v264
  %276 = vmatpush.bf16.msra.mxu0 %v263
  %277 = vmatpush.bf16.msra.mxu0 %v262
  %278 = vmatpush.bf16.msra.mxu0 %v261
  %279 = vmatpush.bf16.msra.mxu0 %v260
  %280 = vmatpush.bf16.msra.mxu0 %v259
  %281 = vmatpush.bf16.msra.mxu0 %v258
  %282 = vmatmul.bf16.gmra.mxu0 %v194
  %v283 = vpop.f32.mrf.mxu0
  %v284 = vadd.f32 0.0, %v283
  %v285 = vpop.f32.mrf.mxu0
  %v286 = vadd.f32 0.0, %v285
  %287 = vmatmul.bf16.gmra.mxu0 %v195
  %v288 = vpop.f32.mrf.mxu0
  %v289 = vadd.f32 0.0, %v288
  %v290 = vpop.f32.mrf.mxu0
  %v291 = vadd.f32 0.0, %v290
  %292 = vmatmul.bf16.gmra.mxu0 %v196
  %v293 = vpop.f32.mrf.mxu0
  %v294 = vadd.f32 0.0, %v293
  %v295 = vpop.f32.mrf.mxu0
  %v296 = vadd.f32 0.0, %v295
  %297 = vmatmul.bf16.gmra.mxu0 %v197
  %v298 = vpop.f32.mrf.mxu0
  %v299 = vadd.f32 0.0, %v298
  %v300 = vpop.f32.mrf.mxu0
  %v301 = vadd.f32 0.0, %v300
  %302 = vmatmul.bf16.gmra.mxu0 %v198
  %v303 = vpop.f32.mrf.mxu0
  %v304 = vadd.f32 0.0, %v303
  %v305 = vpop.f32.mrf.mxu0
  %v306 = vadd.f32 0.0, %v305
  %307 = vmatmul.bf16.gmra.mxu0 %v199
  %v308 = vpop.f32.mrf.mxu0
  %v309 = vadd.f32 0.0, %v308
  %v310 = vpop.f32.mrf.mxu0
  %v311 = vadd.f32 0.0, %v310
  %312 = vmatmul.bf16.gmra.mxu0 %v200
  %v313 = vpop.f32.mrf.mxu0
  %v314 = vadd.f32 0.0, %v313
  %v315 = vpop.f32.mrf.mxu0
  %v316 = vadd.f32 0.0, %v315
  %317 = vmatmul.bf16.gmra.mxu0 %v201
  %v318 = vpop.f32.mrf.mxu0
  %v319 = vadd.f32 0.0, %v318
  %v320 = vpop.f32.mrf.mxu0
  %v321 = vadd.f32 0.0, %v320
  %322 = vmatmul.bf16.gmra.mxu0 %v202
  %v323 = vpop.f32.mrf.mxu0
  %v324 = vadd.f32 0.0, %v323
  %v325 = vpop.f32.mrf.mxu0
  %v326 = vadd.f32 0.0, %v325
  %327 = vmatmul.bf16.gmra.mxu0 %v203
  %v328 = vpop.f32.mrf.mxu0
  %v329 = vadd.f32 0.0, %v328
  %v330 = vpop.f32.mrf.mxu0
  %v331 = vadd.f32 0.0, %v330
  %332 = vmatmul.bf16.gmra.mxu0 %v204
  %v333 = vpop.f32.mrf.mxu0
  %v334 = vadd.f32 0.0, %v333
  %v335 = vpop.f32.mrf.mxu0
  %v336 = vadd.f32 0.0, %v335
  %337 = vmatmul.bf16.gmra.mxu0 %v205
  %v338 = vpop.f32.mrf.mxu0
  %v339 = vadd.f32 0.0, %v338
  %v340 = vpop.f32.mrf.mxu0
  %v341 = vadd.f32 0.0, %v340
  %342 = vmatmul.bf16.gmra.mxu0 %v206
  %v343 = vpop.f32.mrf.mxu0
  %v344 = vadd.f32 0.0, %v343
  %v345 = vpop.f32.mrf.mxu0
  %v346 = vadd.f32 0.0, %v345
  %347 = vmatmul.bf16.gmra.mxu0 %v207
  %v348 = vpop.f32.mrf.mxu0
  %v349 = vadd.f32 0.0, %v348
  %v350 = vpop.f32.mrf.mxu0
  %v351 = vadd.f32 0.0, %v350
  %352 = vmatmul.bf16.gmra.mxu0 %v208
  %v353 = vpop.f32.mrf.mxu0
  %v354 = vadd.f32 0.0, %v353
  %v355 = vpop.f32.mrf.mxu0
  %v356 = vadd.f32 0.0, %v355
  %357 = vmatmul.bf16.gmra.mxu0 %v209
  %v358 = vpop.f32.mrf.mxu0
  %v359 = vadd.f32 0.0, %v358
  %v360 = vpop.f32.mrf.mxu0
  %v361 = vadd.f32 0.0, %v360
  %362 = vdwg.mxu0
  %v363 = vadd.f32 %v50, %v284
  %v364 = vadd.f32 %v51, %v286
  %v365 = vadd.f32 %v52, %v289
  %v366 = vadd.f32 %v53, %v291
  %v367 = vadd.f32 %v54, %v294
  %v368 = vadd.f32 %v55, %v296
  %v369 = vadd.f32 %v56, %v299
  %v370 = vadd.f32 %v57, %v301
  %v371 = vadd.f32 %v58, %v304
  %v372 = vadd.f32 %v59, %v306
  %v373 = vadd.f32 %v60, %v309
  %v374 = vadd.f32 %v61, %v311
  %v375 = vadd.f32 %v62, %v314
  %v376 = vadd.f32 %v63, %v316
  %v377 = vadd.f32 %v64, %v319
  %v378 = vadd.f32 %v65, %v321
  %v379 = vadd.f32 %v66, %v324
  %v380 = vadd.f32 %v67, %v326
  %v381 = vadd.f32 %v68, %v329
  %v382 = vadd.f32 %v69, %v331
  %v383 = vadd.f32 %v70, %v334
  %v384 = vadd.f32 %v71, %v336
  %v385 = vadd.f32 %v72, %v339
  %v386 = vadd.f32 %v73, %v341
  %v387 = vadd.f32 %v74, %v344
  %v388 = vadd.f32 %v75, %v346
  %v389 = vadd.f32 %v76, %v349
  %v390 = vadd.f32 %v77, %v351
  %v391 = vadd.f32 %v78, %v354
  %v392 = vadd.f32 %v79, %v356
  %v393 = vadd.f32 %v80, %v359
  %v394 = vadd.f32 %v81, %v361
  %395 = vst [vmem:[#allocation2] sm:$0xff] %v363
  %396 = vst [vmem:[#allocation2 + $0x8] sm:$0xff] %v364
  %397 = vst [vmem:[#allocation2 + $0x10] sm:$0xff] %v365
  %398 = vst [vmem:[#allocation2 + $0x18] sm:$0xff] %v366
  %399 = vst [vmem:[#allocation2 + $0x20] sm:$0xff] %v367
  %400 = vst [vmem:[#allocation2 + $0x28] sm:$0xff] %v368
  %401 = vst [vmem:[#allocation2 + $0x30] sm:$0xff] %v369
  %402 = vst [vmem:[#allocation2 + $0x38] sm:$0xff] %v370
  %403 = vst [vmem:[#allocation2 + $0x40] sm:$0xff] %v371
  %404 = vst [vmem:[#allocation2 + $0x48] sm:$0xff] %v372
  %405 = vst [vmem:[#allocation2 + $0x50] sm:$0xff] %v373
  %406 = vst [vmem:[#allocation2 + $0x58] sm:$0xff] %v374
  %407 = vst [vmem:[#allocation2 + $0x60] sm:$0xff] %v375
  %408 = vst [vmem:[#allocation2 + $0x68] sm:$0xff] %v376
  %409 = vst [vmem:[#allocation2 + $0x70] sm:$0xff] %v377
  %410 = vst [vmem:[#allocation2 + $0x78] sm:$0xff] %v378
  %411 = vst [vmem:[#allocation2 + $0x80] sm:$0xff] %v379
  %412 = vst [vmem:[#allocation2 + $0x88] sm:$0xff] %v380
  %413 = vst [vmem:[#allocation2 + $0x90] sm:$0xff] %v381
  %414 = vst [vmem:[#allocation2 + $0x98] sm:$0xff] %v382
  %415 = vst [vmem:[#allocation2 + $0xa0] sm:$0xff] %v383
  %416 = vst [vmem:[#allocation2 + $0xa8] sm:$0xff] %v384
  %417 = vst [vmem:[#allocation2 + $0xb0] sm:$0xff] %v385
  %418 = vst [vmem:[#allocation2 + $0xb8] sm:$0xff] %v386
  %419 = vst [vmem:[#allocation2 + $0xc0] sm:$0xff] %v387
  %420 = vst [vmem:[#allocation2 + $0xc8] sm:$0xff] %v388
  %421 = vst [vmem:[#allocation2 + $0xd0] sm:$0xff] %v389
  %422 = vst [vmem:[#allocation2 + $0xd8] sm:$0xff] %v390
  %423 = vst [vmem:[#allocation2 + $0xe0] sm:$0xff] %v391
  %424 = vst [vmem:[#allocation2 + $0xe8] sm:$0xff] %v392
  %425 = vst [vmem:[#allocation2 + $0xf0] sm:$0xff] %v393
  %426 = vst [vmem:[#allocation2 + $0xf8] sm:$0xff] %v394
  // Predicated region
  $region18: #{node_apply.1} parent=0 // pred_check
    %p427 = pneg %p14
  $region19: #{node_apply.1} parent=0 // pred_check_branch
    %429 = sbr.rel (%p427) target = $region21
  $region20: #{node_apply.1} parent=0 // pred_region
    %v430 = vld [vmem:[#allocation2] sm:$0xff]
    %v431 = vld [vmem:[#allocation2 + $0x8] sm:$0xff]
    %v432 = vld [vmem:[#allocation2 + $0x10] sm:$0xff]
    %v433 = vld [vmem:[#allocation2 + $0x18] sm:$0xff]
    %v434 = vld [vmem:[#allocation2 + $0x20] sm:$0xff]
    %v435 = vld [vmem:[#allocation2 + $0x28] sm:$0xff]
    %v436 = vld [vmem:[#allocation2 + $0x30] sm:$0xff]
    %v437 = vld [vmem:[#allocation2 + $0x38] sm:$0xff]
    %v438 = vld [vmem:[#allocation2 + $0x40] sm:$0xff]
    %v439 = vld [vmem:[#allocation2 + $0x48] sm:$0xff]
    %v440 = vld [vmem:[#allocation2 + $0x50] sm:$0xff]
    %v441 = vld [vmem:[#allocation2 + $0x58] sm:$0xff]
    %v442 = vld [vmem:[#allocation2 + $0x60] sm:$0xff]
    %v443 = vld [vmem:[#allocation2 + $0x68] sm:$0xff]
    %v444 = vld [vmem:[#allocation2 + $0x70] sm:$0xff]
    %v445 = vld [vmem:[#allocation2 + $0x78] sm:$0xff]
    %v446 = vld [vmem:[#allocation2 + $0x80] sm:$0xff]
    %v447 = vld [vmem:[#allocation2 + $0x88] sm:$0xff]
    %v448 = vld [vmem:[#allocation2 + $0x90] sm:$0xff]
    %v449 = vld [vmem:[#allocation2 + $0x98] sm:$0xff]
    %v450 = vld [vmem:[#allocation2 + $0xa0] sm:$0xff]
    %v451 = vld [vmem:[#allocation2 + $0xa8] sm:$0xff]
    %v452 = vld [vmem:[#allocation2 + $0xb0] sm:$0xff]
    %v453 = vld [vmem:[#allocation2 + $0xb8] sm:$0xff]
    %v454 = vld [vmem:[#allocation2 + $0xc0] sm:$0xff]
    %v455 = vld [vmem:[#allocation2 + $0xc8] sm:$0xff]
    %v456 = vld [vmem:[#allocation2 + $0xd0] sm:$0xff]
    %v457 = vld [vmem:[#allocation2 + $0xd8] sm:$0xff]
    %v458 = vld [vmem:[#allocation2 + $0xe0] sm:$0xff]
    %v459 = vld [vmem:[#allocation2 + $0xe8] sm:$0xff]
    %v460 = vld [vmem:[#allocation2 + $0xf0] sm:$0xff]
    %v461 = vld [vmem:[#allocation2 + $0xf8] sm:$0xff]
    %v462 = vld [vmem:[%s2] sm:$0x1]
    %v464 = vperm.slane %v462, 0
    %v466 = vadd.f32 %v430, %v464
    %v467 = vadd.f32 %v431, %v464
    %v468 = vadd.f32 %v432, %v464
    %v469 = vadd.f32 %v433, %v464
    %v470 = vadd.f32 %v434, %v464
    %v471 = vadd.f32 %v435, %v464
    %v472 = vadd.f32 %v436, %v464
    %v473 = vadd.f32 %v437, %v464
    %v474 = vadd.f32 %v438, %v464
    %v475 = vadd.f32 %v439, %v464
    %v476 = vadd.f32 %v440, %v464
    %v477 = vadd.f32 %v441, %v464
    %v478 = vadd.f32 %v442, %v464
    %v479 = vadd.f32 %v443, %v464
    %v480 = vadd.f32 %v444, %v464
    %v481 = vadd.f32 %v445, %v464
    %v482 = vadd.f32 %v446, %v464
    %v483 = vadd.f32 %v447, %v464
    %v484 = vadd.f32 %v448, %v464
    %v485 = vadd.f32 %v449, %v464
    %v486 = vadd.f32 %v450, %v464
    %v487 = vadd.f32 %v451, %v464
    %v488 = vadd.f32 %v452, %v464
    %v489 = vadd.f32 %v453, %v464
    %v490 = vadd.f32 %v454, %v464
    %v491 = vadd.f32 %v455, %v464
    %v492 = vadd.f32 %v456, %v464
    %v493 = vadd.f32 %v457, %v464
    %v494 = vadd.f32 %v458, %v464
    %v495 = vadd.f32 %v459, %v464
    %v496 = vadd.f32 %v460, %v464
    %v497 = vadd.f32 %v461, %v464
    %v498 = vmax.f32 %v466, 0.0
    %v499 = vmax.f32 %v467, 0.0
    %v500 = vmax.f32 %v468, 0.0
    %v501 = vmax.f32 %v469, 0.0
    %v502 = vmax.f32 %v470, 0.0
    %v503 = vmax.f32 %v471, 0.0
    %v504 = vmax.f32 %v472, 0.0
    %v505 = vmax.f32 %v473, 0.0
    %v506 = vmax.f32 %v474, 0.0
    %v507 = vmax.f32 %v475, 0.0
    %v508 = vmax.f32 %v476, 0.0
    %v509 = vmax.f32 %v477, 0.0
    %v510 = vmax.f32 %v478, 0.0
    %v511 = vmax.f32 %v479, 0.0
    %v512 = vmax.f32 %v480, 0.0
    %v513 = vmax.f32 %v481, 0.0
    %v514 = vmax.f32 %v482, 0.0
    %v515 = vmax.f32 %v483, 0.0
    %v516 = vmax.f32 %v484, 0.0
    %v517 = vmax.f32 %v485, 0.0
    %v518 = vmax.f32 %v486, 0.0
    %v519 = vmax.f32 %v487, 0.0
    %v520 = vmax.f32 %v488, 0.0
    %v521 = vmax.f32 %v489, 0.0
    %v522 = vmax.f32 %v490, 0.0
    %v523 = vmax.f32 %v491, 0.0
    %v524 = vmax.f32 %v492, 0.0
    %v525 = vmax.f32 %v493, 0.0
    %v526 = vmax.f32 %v494, 0.0
    %v527 = vmax.f32 %v495, 0.0
    %v528 = vmax.f32 %v496, 0.0
    %v529 = vmax.f32 %v497, 0.0
    %530 = vst [vmem:[%s3] sm:$0xff] %v498
    %531 = vst [vmem:[%s3 + $0x8] sm:$0xff] %v499
    %532 = vst [vmem:[%s3 + $0x10] sm:$0xff] %v500
    %533 = vst [vmem:[%s3 + $0x18] sm:$0xff] %v501
    %534 = vst [vmem:[%s3 + $0x20] sm:$0xff] %v502
    %535 = vst [vmem:[%s3 + $0x28] sm:$0xff] %v503
    %536 = vst [vmem:[%s3 + $0x30] sm:$0xff] %v504
    %537 = vst [vmem:[%s3 + $0x38] sm:$0xff] %v505
    %538 = vst [vmem:[%s3 + $0x40] sm:$0xff] %v506
    %539 = vst [vmem:[%s3 + $0x48] sm:$0xff] %v507
    %540 = vst [vmem:[%s3 + $0x50] sm:$0xff] %v508
    %541 = vst [vmem:[%s3 + $0x58] sm:$0xff] %v509
    %542 = vst [vmem:[%s3 + $0x60] sm:$0xff] %v510
    %543 = vst [vmem:[%s3 + $0x68] sm:$0xff] %v511
    %544 = vst [vmem:[%s3 + $0x70] sm:$0xff] %v512
    %545 = vst [vmem:[%s3 + $0x78] sm:$0xff] %v513
    %546 = vst [vmem:[%s3 + $0x80] sm:$0xff] %v514
    %547 = vst [vmem:[%s3 + $0x88] sm:$0xff] %v515
    %548 = vst [vmem:[%s3 + $0x90] sm:$0xff] %v516
    %549 = vst [vmem:[%s3 + $0x98] sm:$0xff] %v517
    %550 = vst [vmem:[%s3 + $0xa0] sm:$0xff] %v518
    %551 = vst [vmem:[%s3 + $0xa8] sm:$0xff] %v519
    %552 = vst [vmem:[%s3 + $0xb0] sm:$0xff] %v520
    %553 = vst [vmem:[%s3 + $0xb8] sm:$0xff] %v521
    %554 = vst [vmem:[%s3 + $0xc0] sm:$0xff] %v522
    %555 = vst [vmem:[%s3 + $0xc8] sm:$0xff] %v523
    %556 = vst [vmem:[%s3 + $0xd0] sm:$0xff] %v524
    %557 = vst [vmem:[%s3 + $0xd8] sm:$0xff] %v525
    %558 = vst [vmem:[%s3 + $0xe0] sm:$0xff] %v526
    %559 = vst [vmem:[%s3 + $0xe8] sm:$0xff] %v527
    %560 = vst [vmem:[%s3 + $0xf0] sm:$0xff] %v528
    %561 = vst [vmem:[%s3 + $0xf8] sm:$0xff] %v529
  $region21: #{node_apply.1} parent=0 // pred_fallthru
    _
  // Predicated region
  $region22: #{node_apply.1} parent=0 // pred_check
    _
  $region23: #{node_apply.1} parent=0 // pred_check_branch
    %563 = sbr.rel (0) target = $region25
  $region24: #{node_apply.1} parent=0 // pred_region
    _
  $region25: #{node_apply.1} parent=0 // pred_fallthru
    _
  // Predicated region
  $region26: #{node_apply.1} parent=0 // pred_check
    _
  $region27: #{node_apply.1} parent=0 // pred_check_branch
    %565 = sbr.rel (0) target = $region29
  $region28: #{node_apply.1} parent=0 // pred_region
    _
  $region29: #{node_apply.1} parent=0 // pred_fallthru
    _

</llo_original>
